<compile_context>
chip_gen: v5e
topology: v5e:2x2
jax: 0.10.0
libtpu: 0.0.40
codegen_flags: <defaults>
</compile_context>

<pallas_src>
import numpy as np
import jax
import jax.numpy as jnp
from jax import lax
from jax.experimental import pallas as pl
from jax.experimental.pallas import tpu as pltpu

LANE = 128


def _round_up(x, m):
    return (x + m - 1) // m * m


def make_kernel(dim, order, num_pad, p_pad, tile_n):
    P = order + 1
    num_slabs = tile_n // LANE

    def kernel(x_ref, s_ref, b_ref, o_ref):
        # x_ref : (dim, tile_n)          sample coordinates (lane-dense rows)
        # s_ref : (dim, num_pad, p_pad)  per-dim one-hot selection; Linear weight
        #                                folded into the last dim's block (VMEM resident)
        # b_ref : (1, 1) in SMEM         Linear bias
        # o_ref : (1, tile_n)            lane-dense output row
        bias = b_ref[0, 0]
        ones_row = jnp.ones((1, LANE), jnp.float32)                 # hoisted constants
        zero_pad = (jnp.zeros((p_pad - P, LANE), jnp.float32)
                    if p_pad > P else None)

        for s in range(num_slabs):            # static unroll over 128-lane slabs
            lo = s * LANE
            feat = None
            for d in range(dim):
                xd = x_ref[d:d + 1, lo:lo + LANE]                   # (1, 128)
                rows = [ones_row]                                   # P_0
                if order > 0:
                    rows.append(xd)                                 # P_1
                    p_prev, p_cur = ones_row, xd
                    for j in range(1, order):
                        # (j+1) P_{j+1} = (2j+1) x P_j - j P_{j-1}; constants folded.
                        c1 = float(2 * j + 1) / float(j + 1)
                        c2 = float(j) / float(j + 1)
                        p_next = c1 * xd * p_cur - c2 * p_prev
                        rows.append(p_next)
                        p_prev, p_cur = p_cur, p_next
                if zero_pad is not None:
                    rows.append(zero_pad)
                polys = jnp.concatenate(rows, axis=0)               # (p_pad, 128)
                # One-hot selection on the MXU; VPU only ran the recurrence above.
                g = jnp.dot(s_ref[d], polys,
                            preferred_element_type=jnp.float32,
                            precision=lax.Precision.HIGHEST)        # (num_pad, 128)
                feat = g if feat is None else feat * g              # tensor product
            # Linear weight already folded into s_ref[dim-1] -> sublane reduce = dot.
            o_ref[0:1, lo:lo + LANE] = (
                jnp.sum(feat, axis=0, keepdims=True) + bias)

    return kernel


def build_selection_onehot(dim, order, num_pad, p_pad):
    """S[d, k, j] = 1 iff feature k uses degree j for dim d.

    Feature ordering is row-major with dim 0 varying slowest, matching
    torch.cartesian_prod in the reference module.  Rows >= (order+1)**dim and
    degree columns >= order+1 are zero padding (they contribute exact zeros)."""
    P = order + 1
    num = P ** dim
    idx = np.indices((P,) * dim).reshape(dim, num)
    S = np.zeros((dim, num_pad, p_pad), np.float32)
    rows = np.arange(num)
    for d in range(dim):
        S[d, rows, idx[d]] = 1.0
    return S


def multivariate_poly(x, w, b, *, dim, order, tile_n=2048):
    """Forward pass of MultiVariatePoly. x: (N, dim) f32, w: (num, 1), b: (1, 1)."""
    N = int(x.shape[0])
    P = order + 1
    num = P ** dim
    num_pad = _round_up(num, 8)     # sublane multiple for the feature axis
    p_pad = _round_up(P, 8)         # sublane-aligned contraction dim for the MXU

    # Lane-dense tiling over N: force tile_n to a multiple of 128, and cap it so
    # the grid keeps >= ~4 steps when N allows (v7x megacore; no-op on v5e/v6e).
    tile_n = _round_up(max(int(tile_n), LANE), LANE)
    tile_n = max(LANE, min(tile_n, _round_up(pl.cdiv(N, 4), LANE)))
    N_pad = _round_up(N, tile_n)
    grid = (N_pad // tile_n,)

    # Host-side constant prep (layout plumbing, not compute).
    xT = jnp.pad(jnp.asarray(x, jnp.float32).T, ((0, 0), (0, N_pad - N)))
    S = jnp.asarray(build_selection_onehot(dim, order, num_pad, p_pad))
    w_pad = jnp.zeros((num_pad, 1), jnp.float32).at[:num, :].set(
        jnp.asarray(w, jnp.float32).reshape(num, 1))
    S = S.at[dim - 1].set(S[dim - 1] * w_pad)    # fold Linear weight into last dim
    b2 = jnp.asarray(b, jnp.float32).reshape(1, 1)

    # VMEM budget derived from actual buffers (double-buffered x/out blocks +
    # lane-padded resident S), with headroom; stays far below v7x's 64 MiB.
    x_block = dim * tile_n * 4
    out_block = tile_n * 4
    s_resident = dim * num_pad * max(p_pad, LANE) * 4
    vmem_limit = 2 * (x_block + out_block) + 2 * s_resident + (2 << 20)
    vmem_limit = int(min(max(vmem_limit, 8 << 20), 64 << 20))

    # Advisory cost for XLA's scheduler.
    flops = N_pad * (dim * 2 * num_pad * p_pad              # selection matmuls (MXU)
                     + (dim - 1) * num_pad + num_pad        # product + sublane reduce
                     + 4 * dim * max(order - 1, 0))         # Legendre recurrence
    bytes_accessed = 4 * (dim * N_pad + N_pad + dim * num_pad * p_pad + 1)

    kernel = make_kernel(dim, order, num_pad, p_pad, tile_n)
    out = pl.pallas_call(
        kernel,
        out_shape=jax.ShapeDtypeStruct((1, N_pad), jnp.float32),
        grid=grid,
        in_specs=[
            pl.BlockSpec((dim, tile_n), lambda i: (0, i)),             # x tile
            pl.BlockSpec((dim, num_pad, p_pad), lambda i: (0, 0, 0)),  # S (resident)
            pl.BlockSpec(memory_space=pltpu.MemorySpace.SMEM),         # bias scalar
        ],
        out_specs=pl.BlockSpec((1, tile_n), lambda i: (0, i)),
        compiler_params=pltpu.CompilerParams(
            dimension_semantics=("parallel",),
            vmem_limit_bytes=vmem_limit,
        ),
        cost_estimate=pl.CostEstimate(
            flops=int(flops), transcendentals=0,
            bytes_accessed=int(bytes_accessed)),
    )(xT, S, b2)

    return out[0, :N].reshape(N, 1)


def ref_forward(x, w, b, *, dim, order):
    """Pure-JAX reference replicating the PyTorch forward."""
    N = x.shape[0]
    Ls = []
    for d in range(dim):
        xc = x[:, d]
        polys = [jnp.ones_like(xc)]
        if order > 0:
            polys.append(xc)
            for ii in range(1, order):
                polys.append(((2 * ii + 1) * xc * polys[-1] - ii * polys[-2]) / (ii + 1))
        Ls.append(jnp.stack(polys, axis=1))              # (N, order+1)
    feat = jnp.ones((N, 1), jnp.float32)
    for d in range(dim):                                 # first dim varies slowest
        feat = (feat[:, :, None] * Ls[d][:, None, :]).reshape(N, -1)
    return feat @ w + b[0, 0]


if __name__ == "__main__":
    dim, order = 3, 3
    P = order + 1
    num = P ** dim                                       # 64

    key = jax.random.PRNGKey(0)
    kx, kw, kb, kx2, kx3 = jax.random.split(key, 5)

    # Deterministic Linear(num, 1) init (PyTorch-style uniform bound).
    bound = 1.0 / np.sqrt(num)
    w = jax.random.uniform(kw, (num, 1), jnp.float32, minval=-bound, maxval=bound)
    b = jax.random.uniform(kb, (1, 1), jnp.float32, minval=-bound, maxval=bound)

    # 1) Tiny batch: single grid step, single 128-lane slab.
    N = 8
    x = jax.random.uniform(kx, (N, dim), jnp.float32, minval=-1.0, maxval=1.0)
    out = jax.block_until_ready(multivariate_poly(x, w, b, dim=dim, order=order))
    ref = ref_forward(x, w, b, dim=dim, order=order)
    assert out.shape == (N, 1)
    assert jnp.allclose(out, ref, atol=2e-4, rtol=2e-4), (out, ref)

    # 2) Multi-step grid + padded tail tile.
    N2 = 300
    x2 = jax.random.uniform(kx2, (N2, dim), jnp.float32, minval=-1.0, maxval=1.0)
    out2 = jax.block_until_ready(
        multivariate_poly(x2, w, b, dim=dim, order=order, tile_n=128))
    ref2 = ref_forward(x2, w, b, dim=dim, order=order)
    assert out2.shape == (N2, 1)
    assert jnp.allclose(out2, ref2, atol=2e-4, rtol=2e-4), (out2, ref2)

    # 3) Multi-slab tiles (tile_n > 128) + multi-step grid + tail padding.
    N3 = 2500
    x3 = jax.random.uniform(kx3, (N3, dim), jnp.float32, minval=-1.0, maxval=1.0)
    out3 = jax.block_until_ready(
        multivariate_poly(x3, w, b, dim=dim, order=order, tile_n=1024))
    ref3 = ref_forward(x3, w, b, dim=dim, order=order)
    assert out3.shape == (N3, 1)
    assert jnp.allclose(out3, ref3, atol=2e-4, rtol=2e-4), (out3, ref3)

    print("KERNEL_OK")
</pallas_src>

<mosaic_0001>
module attributes {stable_mosaic.version = 11 : i64} {
  func.func @kernel(%arg0: i32, %arg1: memref<3x128xf32, #tpu.memory_space<vmem>>, %arg2: memref<3x64x8xf32, #tpu.memory_space<vmem>>, %arg3: memref<1x1xf32, #tpu.memory_space<smem>>, %arg4: memref<1x128xf32, #tpu.memory_space<vmem>>) attributes {dimension_semantics = [#tpu.dimension_semantics<parallel>], iteration_bounds = array<i64: 1>, scalar_prefetch = 0 : i64, scratch_operands = 0 : i64, tpu.core_type = #tpu.core_type<tc>, window_params = [{transform_indices = @transform_0, window_bounds = array<i64: 3, 128>}, {pipeline_mode = #tpu.pipeline_mode<synchronous>, transform_indices = @transform_1, window_bounds = array<i64: 3, 64, 8>}, {transform_indices = @transform_2, window_bounds = array<i64: 1, 1>}, {transform_indices = @transform_3, window_bounds = array<i64: 1, 128>}]} {
    %c0 = arith.constant 0 : index
    %c0_0 = arith.constant 0 : index
    %0 = memref.load %arg3[%c0, %c0_0] : memref<1x1xf32, #tpu.memory_space<smem>>
    %cst = arith.constant 1.000000e+00 : f32
    %1 = vector.broadcast %cst : f32 to vector<1x128xf32>
    %cst_1 = arith.constant 0.000000e+00 : f32
    %2 = vector.broadcast %cst_1 : f32 to vector<4x128xf32>
    %c0_2 = arith.constant 0 : index
    %c0_3 = arith.constant 0 : index
    %3 = vector.load %arg1[%c0_2, %c0_3] : memref<3x128xf32, #tpu.memory_space<vmem>>, vector<1x128xf32>
    %cst_4 = arith.constant 1.500000e+00 : f32
    %4 = vector.broadcast %cst_4 : f32 to vector<1x128xf32>
    %5 = arith.mulf %4, %3 : vector<1x128xf32>
    %6 = arith.mulf %5, %3 : vector<1x128xf32>
    %cst_5 = arith.constant 5.000000e-01 : f32
    %7 = vector.broadcast %cst_5 : f32 to vector<1x128xf32>
    %8 = arith.mulf %7, %1 : vector<1x128xf32>
    %9 = arith.subf %6, %8 : vector<1x128xf32>
    %cst_6 = arith.constant 1.66666663 : f32
    %10 = vector.broadcast %cst_6 : f32 to vector<1x128xf32>
    %11 = arith.mulf %10, %3 : vector<1x128xf32>
    %12 = arith.mulf %11, %9 : vector<1x128xf32>
    %cst_7 = arith.constant 0.666666686 : f32
    %13 = vector.broadcast %cst_7 : f32 to vector<1x128xf32>
    %14 = arith.mulf %13, %3 : vector<1x128xf32>
    %15 = arith.subf %12, %14 : vector<1x128xf32>
    %16 = tpu.concatenate %1, %3, %9, %15, %2 in 0 : vector<1x128xf32>, vector<1x128xf32>, vector<1x128xf32>, vector<1x128xf32>, vector<4x128xf32> -> vector<8x128xf32>
    %c0_8 = arith.constant 0 : index
    %c0_9 = arith.constant 0 : index
    %c0_10 = arith.constant 0 : index
    %17 = vector.load %arg2[%c0_8, %c0_9, %c0_10] : memref<3x64x8xf32, #tpu.memory_space<vmem>>, vector<1x64x8xf32>
    %18 = vector.shape_cast %17 : vector<1x64x8xf32> to vector<64x8xf32>
    %cst_11 = arith.constant dense<0.000000e+00> : vector<64x128xf32>
    %19 = tpu.matmul %18, %16, %cst_11 {dimension_numbers = #tpu.dot_dimension_numbers<[1], [0], [0], [1], [0, 0, 1, 1], [], []>, precision = #tpu.contract_precision<fp32>} : vector<64x8xf32>, vector<8x128xf32>, vector<64x128xf32> -> vector<64x128xf32>
    %c1 = arith.constant 1 : index
    %c0_12 = arith.constant 0 : index
    %20 = vector.load %arg1[%c1, %c0_12] : memref<3x128xf32, #tpu.memory_space<vmem>>, vector<1x128xf32>
    %cst_13 = arith.constant 1.500000e+00 : f32
    %21 = vector.broadcast %cst_13 : f32 to vector<1x128xf32>
    %22 = arith.mulf %21, %20 : vector<1x128xf32>
    %23 = arith.mulf %22, %20 : vector<1x128xf32>
    %cst_14 = arith.constant 5.000000e-01 : f32
    %24 = vector.broadcast %cst_14 : f32 to vector<1x128xf32>
    %25 = arith.mulf %24, %1 : vector<1x128xf32>
    %26 = arith.subf %23, %25 : vector<1x128xf32>
    %cst_15 = arith.constant 1.66666663 : f32
    %27 = vector.broadcast %cst_15 : f32 to vector<1x128xf32>
    %28 = arith.mulf %27, %20 : vector<1x128xf32>
    %29 = arith.mulf %28, %26 : vector<1x128xf32>
    %cst_16 = arith.constant 0.666666686 : f32
    %30 = vector.broadcast %cst_16 : f32 to vector<1x128xf32>
    %31 = arith.mulf %30, %20 : vector<1x128xf32>
    %32 = arith.subf %29, %31 : vector<1x128xf32>
    %33 = tpu.concatenate %1, %20, %26, %32, %2 in 0 : vector<1x128xf32>, vector<1x128xf32>, vector<1x128xf32>, vector<1x128xf32>, vector<4x128xf32> -> vector<8x128xf32>
    %c1_17 = arith.constant 1 : index
    %c0_18 = arith.constant 0 : index
    %c0_19 = arith.constant 0 : index
    %34 = vector.load %arg2[%c1_17, %c0_18, %c0_19] : memref<3x64x8xf32, #tpu.memory_space<vmem>>, vector<1x64x8xf32>
    %35 = vector.shape_cast %34 : vector<1x64x8xf32> to vector<64x8xf32>
    %cst_20 = arith.constant dense<0.000000e+00> : vector<64x128xf32>
    %36 = tpu.matmul %35, %33, %cst_20 {dimension_numbers = #tpu.dot_dimension_numbers<[1], [0], [0], [1], [0, 0, 1, 1], [], []>, precision = #tpu.contract_precision<fp32>} : vector<64x8xf32>, vector<8x128xf32>, vector<64x128xf32> -> vector<64x128xf32>
    %37 = arith.mulf %19, %36 : vector<64x128xf32>
    %c2 = arith.constant 2 : index
    %c0_21 = arith.constant 0 : index
    %38 = vector.load %arg1[%c2, %c0_21] : memref<3x128xf32, #tpu.memory_space<vmem>>, vector<1x128xf32>
    %cst_22 = arith.constant 1.500000e+00 : f32
    %39 = vector.broadcast %cst_22 : f32 to vector<1x128xf32>
    %40 = arith.mulf %39, %38 : vector<1x128xf32>
    %41 = arith.mulf %40, %38 : vector<1x128xf32>
    %cst_23 = arith.constant 5.000000e-01 : f32
    %42 = vector.broadcast %cst_23 : f32 to vector<1x128xf32>
    %43 = arith.mulf %42, %1 : vector<1x128xf32>
    %44 = arith.subf %41, %43 : vector<1x128xf32>
    %cst_24 = arith.constant 1.66666663 : f32
    %45 = vector.broadcast %cst_24 : f32 to vector<1x128xf32>
    %46 = arith.mulf %45, %38 : vector<1x128xf32>
    %47 = arith.mulf %46, %44 : vector<1x128xf32>
    %cst_25 = arith.constant 0.666666686 : f32
    %48 = vector.broadcast %cst_25 : f32 to vector<1x128xf32>
    %49 = arith.mulf %48, %38 : vector<1x128xf32>
    %50 = arith.subf %47, %49 : vector<1x128xf32>
    %51 = tpu.concatenate %1, %38, %44, %50, %2 in 0 : vector<1x128xf32>, vector<1x128xf32>, vector<1x128xf32>, vector<1x128xf32>, vector<4x128xf32> -> vector<8x128xf32>
    %c2_26 = arith.constant 2 : index
    %c0_27 = arith.constant 0 : index
    %c0_28 = arith.constant 0 : index
    %52 = vector.load %arg2[%c2_26, %c0_27, %c0_28] : memref<3x64x8xf32, #tpu.memory_space<vmem>>, vector<1x64x8xf32>
    %53 = vector.shape_cast %52 : vector<1x64x8xf32> to vector<64x8xf32>
    %cst_29 = arith.constant dense<0.000000e+00> : vector<64x128xf32>
    %54 = tpu.matmul %53, %51, %cst_29 {dimension_numbers = #tpu.dot_dimension_numbers<[1], [0], [0], [1], [0, 0, 1, 1], [], []>, precision = #tpu.contract_precision<fp32>} : vector<64x8xf32>, vector<8x128xf32>, vector<64x128xf32> -> vector<64x128xf32>
    %55 = arith.mulf %37, %54 : vector<64x128xf32>
    %cst_30 = arith.constant dense<0.000000e+00> : vector<128xf32>
    %56 = vector.multi_reduction <add>, %55, %cst_30 [0] : vector<64x128xf32> to vector<128xf32>
    %57 = vector.shape_cast %56 : vector<128xf32> to vector<1x128xf32>
    %58 = vector.broadcast %0 : f32 to vector<1x128xf32>
    %59 = arith.addf %57, %58 : vector<1x128xf32>
    %c0_31 = arith.constant 0 : index
    %c0_32 = arith.constant 0 : index
    %60 = vector.load %arg4[%c0_31, %c0_32] : memref<1x128xf32, #tpu.memory_space<vmem>>, vector<1x128xf32>
    tpu.vector_store %arg4[%c0_31, %c0_32], %59 {strides = array<i32>} : memref<1x128xf32, #tpu.memory_space<vmem>>, vector<1x128xf32>,
    return
  }
  func.func @transform_0(%arg0: i32) -> (i32, i32) {
    %c0_i32 = arith.constant 0 : i32
    %c0_i32_0 = arith.constant 0 : i32
    return %c0_i32, %arg0 : i32, i32
  }
  func.func @transform_1(%arg0: i32) -> (i32, i32, i32) {
    %c0_i32 = arith.constant 0 : i32
    %c0_i32_0 = arith.constant 0 : i32
    %c0_i32_1 = arith.constant 0 : i32
    %c0_i32_2 = arith.constant 0 : i32
    return %c0_i32, %c0_i32_0, %c0_i32_1 : i32, i32, i32
  }
  func.func @transform_2(%arg0: i32) -> (i32, i32) {
    %c0_i32 = arith.constant 0 : i32
    %c0_i32_0 = arith.constant 0 : i32
    %c0_i32_1 = arith.constant 0 : i32
    return %c0_i32, %c0_i32_0 : i32, i32
  }
  func.func @transform_3(%arg0: i32) -> (i32, i32) {
    %c0_i32 = arith.constant 0 : i32
    %c0_i32_0 = arith.constant 0 : i32
    return %c0_i32, %arg0 : i32, i32
  }
}

</mosaic_0001>

<llo_original>
// kernel: tpu_custom_call.1
$region0: #{tpu_custom_call.1}
  #allocation0 [shape = 'u32[]', space=smem, size = 0x4, offset = 0x4, fixed_abs, tag = 'smem constant byte address 0x4 - core index']
  #allocation1 [shape = 'u32[72,128]{1,0:T(1,128)}', space=vmem, size = 0x9000, scoped, tag = 'internal scratch']
  #allocation2 [shape = 'f32[1,1]{1,0:T(1,128)S(6)}', space=smem, size = 0x200, scoped, tag = 'scoped memory for tpu_custom_call.1']
  %s0 = inlined_call_operand.vmem [shape: f32[3,128], index: 0, kind: input, shape index: {}]
  %s1 = inlined_call_operand.vmem [shape: f32[3,64,8], index: 1, kind: input, shape index: {}]
  %s2 = inlined_call_operand.<no memory space> [shape: f32[1,1], index: 2, kind: input, shape index: {}]
  %s3 = inlined_call_operand.hbm [shape: f32[1,128], index: 3, kind: output, shape index: {}]
  %s4 = sld [smem:[#allocation0]]
  $region22: #{tpu_custom_call.1} parent=0
    _
  %s6 = ssub.s32 1, %s4
  %s7 = scalar_select 0, %s6, %s4
  %8 = sst [smem:[#allocation2]] %s2
  $region1: #{tpu_custom_call.1} parent=0
    #allocation3 [shape = 'u8[512]{0}', space=vmem, size = 0x400, scoped, tag = 'output window, operand 0, single buffered']
    #allocation4 [shape = 's32[1]{0}', space=sflag, size = 0x4, scoped, tag = 'scoped memory for tpu_custom_call.1']
    %9 = vsyncpa [#allocation4], 0
    // Predicated region
    $region2: #{tpu_custom_call.1} parent=1 // pred_check
      _
    $region3: #{tpu_custom_call.1} parent=1 // pred_check_branch
      %11 = sbr.rel (0) target = $region5
    $region4: #{tpu_custom_call.1} parent=1 // pred_region
      _
    $region5: #{tpu_custom_call.1} parent=1 // pred_fallthru
      _
    // Predicated region
    $region6: #{tpu_custom_call.1} parent=1 // pred_check
      _
    $region7: #{tpu_custom_call.1} parent=1 // pred_check_branch
      %13 = sbr.rel (0) target = $region9
    $region8: #{tpu_custom_call.1} parent=1 // pred_region
      _
    $region9: #{tpu_custom_call.1} parent=1 // pred_fallthru
      _
    // Predicated region
    $region10: #{tpu_custom_call.1} parent=1 // pred_check
      _
    $region11: #{tpu_custom_call.1} parent=1 // pred_check_branch
      %15 = sbr.rel (0) target = $region13
    $region12: #{tpu_custom_call.1} parent=1 // pred_region
      _
    $region13: #{tpu_custom_call.1} parent=1 // pred_fallthru
      _
    %s16 = sld [smem:[#allocation2]]
    %v17 = vld [vmem:[%s0] sm:$0x1]
    %v18 = vmul.f32 %v17, 1.5
    %v19 = vmul.f32 %v18, %v17
    %v20 = vsub.f32 %v19, 0.5
    %v21 = vmul.f32 %v17, 1.6666666
    %v22 = vmul.f32 %v21, %v20
    %v23 = vmul.f32 %v17, 0.6666667
    %v24 = vsub.f32 %v22, %v23
    %v26 = vrot.slane %v17, 7
    %v29 = vrot.slane %v20, 6
    %v32 = vrot.slane %v24, 5
    %vm34 = vcmask 1040384
    %v35 = vsel %vm34, 1.0, %v26
    %vm36 = vcmask 1041408
    %v37 = vsel %vm36, %v35, %v29
    %vm38 = vcmask 1042432
    %v39 = vsel %vm38, %v37, %v32
    %vm40 = vcmask 1043456
    %v41 = vsel %vm40, %v39, 0.0
    %v42 = vld [vmem:[%s1] sm:$0xff]
    %v43 = vld [vmem:[%s1 + $0x8] sm:$0xff]
    %v44 = vld [vmem:[%s1 + $0x10] sm:$0xff]
    %v45 = vld [vmem:[%s1 + $0x18] sm:$0xff]
    %v46 = vld [vmem:[%s1 + $0x20] sm:$0xff]
    %v47 = vld [vmem:[%s1 + $0x28] sm:$0xff]
    %v48 = vld [vmem:[%s1 + $0x30] sm:$0xff]
    %v49 = vld [vmem:[%s1 + $0x38] sm:$0xff]
    %vm50 = vcmask 64512
    %v52 = vsel %vm50, %v42, 0
    %v55 = vsel %vm50, %v43, 0
    %v58 = vsel %vm50, %v44, 0
    %v61 = vsel %vm50, %v45, 0
    %v64 = vsel %vm50, %v46, 0
    %v67 = vsel %vm50, %v47, 0
    %v70 = vsel %vm50, %v48, 0
    %v73 = vsel %vm50, %v49, 0
    %75 = vmatpush.msra.mxu0 0.0
    %76 = vmatpush.msra.mxu0 0.0
    %77 = vmatpush.msra.mxu0 0.0
    %78 = vmatpush.msra.mxu0 0.0
    %79 = vmatpush.msra.mxu0 0.0
    %80 = vmatpush.msra.mxu0 0.0
    %81 = vmatpush.msra.mxu0 0.0
    %82 = vmatpush.msra.mxu0 0.0
    %83 = vmatpush.msra.mxu0 0.0
    %84 = vmatpush.msra.mxu0 0.0
    %85 = vmatpush.msra.mxu0 0.0
    %86 = vmatpush.msra.mxu0 0.0
    %87 = vmatpush.msra.mxu0 0.0
    %88 = vmatpush.msra.mxu0 0.0
    %89 = vmatpush.msra.mxu0 0.0
    %v90 = vand.u32 %v41, 4294901760
    %91 = vmatpush.msra.mxu0 %v90
    %v92 = vand.u32 %v52, 4294901760
    %v93 = vsub.f32 %v52, %v92
    %v94 = vand.u32 %v93, 4294901760
    %v95 = vsub.f32 %v93, %v94
    %v96 = vand.u32 %v95, 4294901760
    %97 = vmatmul.f32.gmra.mxu0 %v96
    %v98 = vpop.f32.mrf.mxu0
    %v99 = vadd.f32 0.0, %v98
    %v100 = vand.u32 %v55, 4294901760
    %v101 = vsub.f32 %v55, %v100
    %v102 = vand.u32 %v101, 4294901760
    %v103 = vsub.f32 %v101, %v102
    %v104 = vand.u32 %v103, 4294901760
    %105 = vmatmul.f32.gmra.mxu0 %v104
    %v106 = vpop.f32.mrf.mxu0
    %v107 = vadd.f32 0.0, %v106
    %v108 = vand.u32 %v58, 4294901760
    %v109 = vsub.f32 %v58, %v108
    %v110 = vand.u32 %v109, 4294901760
    %v111 = vsub.f32 %v109, %v110
    %v112 = vand.u32 %v111, 4294901760
    %113 = vmatmul.f32.gmra.mxu0 %v112
    %v114 = vpop.f32.mrf.mxu0
    %v115 = vadd.f32 0.0, %v114
    %v116 = vand.u32 %v61, 4294901760
    %v117 = vsub.f32 %v61, %v116
    %v118 = vand.u32 %v117, 4294901760
    %v119 = vsub.f32 %v117, %v118
    %v120 = vand.u32 %v119, 4294901760
    %121 = vmatmul.f32.gmra.mxu0 %v120
    %v122 = vpop.f32.mrf.mxu0
    %v123 = vadd.f32 0.0, %v122
    %v124 = vand.u32 %v64, 4294901760
    %v125 = vsub.f32 %v64, %v124
    %v126 = vand.u32 %v125, 4294901760
    %v127 = vsub.f32 %v125, %v126
    %v128 = vand.u32 %v127, 4294901760
    %129 = vmatmul.f32.gmra.mxu0 %v128
    %v130 = vpop.f32.mrf.mxu0
    %v131 = vadd.f32 0.0, %v130
    %v132 = vand.u32 %v67, 4294901760
    %v133 = vsub.f32 %v67, %v132
    %v134 = vand.u32 %v133, 4294901760
    %v135 = vsub.f32 %v133, %v134
    %v136 = vand.u32 %v135, 4294901760
    %137 = vmatmul.f32.gmra.mxu0 %v136
    %v138 = vpop.f32.mrf.mxu0
    %v139 = vadd.f32 0.0, %v138
    %v140 = vand.u32 %v70, 4294901760
    %v141 = vsub.f32 %v70, %v140
    %v142 = vand.u32 %v141, 4294901760
    %v143 = vsub.f32 %v141, %v142
    %v144 = vand.u32 %v143, 4294901760
    %145 = vmatmul.f32.gmra.mxu0 %v144
    %v146 = vpop.f32.mrf.mxu0
    %v147 = vadd.f32 0.0, %v146
    %v148 = vand.u32 %v73, 4294901760
    %v149 = vsub.f32 %v73, %v148
    %v150 = vand.u32 %v149, 4294901760
    %v151 = vsub.f32 %v149, %v150
    %v152 = vand.u32 %v151, 4294901760
    %153 = vmatmul.f32.gmra.mxu0 %v152
    %v154 = vpop.f32.mrf.mxu0
    %v155 = vadd.f32 0.0, %v154
    %156 = vdwg.mxu0
    %157 = vmatpush.msra.mxu0 0.0
    %158 = vmatpush.msra.mxu0 0.0
    %159 = vmatpush.msra.mxu0 0.0
    %160 = vmatpush.msra.mxu0 0.0
    %161 = vmatpush.msra.mxu0 0.0
    %162 = vmatpush.msra.mxu0 0.0
    %163 = vmatpush.msra.mxu0 0.0
    %164 = vmatpush.msra.mxu0 0.0
    %165 = vmatpush.msra.mxu0 0.0
    %166 = vmatpush.msra.mxu0 0.0
    %167 = vmatpush.msra.mxu0 0.0
    %168 = vmatpush.msra.mxu0 0.0
    %169 = vmatpush.msra.mxu0 0.0
    %170 = vmatpush.msra.mxu0 0.0
    %171 = vmatpush.msra.mxu0 0.0
    %v172 = vand.u32 %v41, 4294901760
    %v173 = vsub.f32 %v41, %v172
    %v174 = vand.u32 %v173, 4294901760
    %v175 = vsub.f32 %v173, %v174
    %v176 = vand.u32 %v175, 4294901760
    %177 = vmatpush.msra.mxu0 %v176
    %v178 = vand.u32 %v52, 4294901760
    %179 = vmatmul.f32.gmra.mxu0 %v178
    %v180 = vpop.f32.mrf.mxu0
    %v181 = vadd.f32 %v99, %v180
    %v182 = vand.u32 %v55, 4294901760
    %183 = vmatmul.f32.gmra.mxu0 %v182
    %v184 = vpop.f32.mrf.mxu0
    %v185 = vadd.f32 %v107, %v184
    %v186 = vand.u32 %v58, 4294901760
    %187 = vmatmul.f32.gmra.mxu0 %v186
    %v188 = vpop.f32.mrf.mxu0
    %v189 = vadd.f32 %v115, %v188
    %v190 = vand.u32 %v61, 4294901760
    %191 = vmatmul.f32.gmra.mxu0 %v190
    %v192 = vpop.f32.mrf.mxu0
    %v193 = vadd.f32 %v123, %v192
    %v194 = vand.u32 %v64, 4294901760
    %195 = vmatmul.f32.gmra.mxu0 %v194
    %v196 = vpop.f32.mrf.mxu0
    %v197 = vadd.f32 %v131, %v196
    %v198 = vand.u32 %v67, 4294901760
    %199 = vmatmul.f32.gmra.mxu0 %v198
    %v200 = vpop.f32.mrf.mxu0
    %v201 = vadd.f32 %v139, %v200
    %v202 = vand.u32 %v70, 4294901760
    %203 = vmatmul.f32.gmra.mxu0 %v202
    %v204 = vpop.f32.mrf.mxu0
    %v205 = vadd.f32 %v147, %v204
    %v206 = vand.u32 %v73, 4294901760
    %207 = vmatmul.f32.gmra.mxu0 %v206
    %v208 = vpop.f32.mrf.mxu0
    %v209 = vadd.f32 %v155, %v208
    %210 = vdwg.mxu0
    %211 = vmatpush.msra.mxu0 0.0
    %212 = vmatpush.msra.mxu0 0.0
    %213 = vmatpush.msra.mxu0 0.0
    %214 = vmatpush.msra.mxu0 0.0
    %215 = vmatpush.msra.mxu0 0.0
    %216 = vmatpush.msra.mxu0 0.0
    %217 = vmatpush.msra.mxu0 0.0
    %218 = vmatpush.msra.mxu0 0.0
    %219 = vmatpush.msra.mxu0 0.0
    %220 = vmatpush.msra.mxu0 0.0
    %221 = vmatpush.msra.mxu0 0.0
    %222 = vmatpush.msra.mxu0 0.0
    %223 = vmatpush.msra.mxu0 0.0
    %224 = vmatpush.msra.mxu0 0.0
    %225 = vmatpush.msra.mxu0 0.0
    %v226 = vand.u32 %v41, 4294901760
    %v227 = vsub.f32 %v41, %v226
    %228 = vmatpush.msra.mxu0 %v227
    %v229 = vand.u32 %v52, 4294901760
    %v230 = vsub.f32 %v52, %v229
    %231 = vmatmul.f32.gmra.mxu0 %v230
    %v232 = vpop.f32.mrf.mxu0
    %v233 = vadd.f32 %v181, %v232
    %v234 = vand.u32 %v55, 4294901760
    %v235 = vsub.f32 %v55, %v234
    %236 = vmatmul.f32.gmra.mxu0 %v235
    %v237 = vpop.f32.mrf.mxu0
    %v238 = vadd.f32 %v185, %v237
    %v239 = vand.u32 %v58, 4294901760
    %v240 = vsub.f32 %v58, %v239
    %241 = vmatmul.f32.gmra.mxu0 %v240
    %v242 = vpop.f32.mrf.mxu0
    %v243 = vadd.f32 %v189, %v242
    %v244 = vand.u32 %v61, 4294901760
    %v245 = vsub.f32 %v61, %v244
    %246 = vmatmul.f32.gmra.mxu0 %v245
    %v247 = vpop.f32.mrf.mxu0
    %v248 = vadd.f32 %v193, %v247
    %v249 = vand.u32 %v64, 4294901760
    %v250 = vsub.f32 %v64, %v249
    %251 = vmatmul.f32.gmra.mxu0 %v250
    %v252 = vpop.f32.mrf.mxu0
    %v253 = vadd.f32 %v197, %v252
    %v254 = vand.u32 %v67, 4294901760
    %v255 = vsub.f32 %v67, %v254
    %256 = vmatmul.f32.gmra.mxu0 %v255
    %v257 = vpop.f32.mrf.mxu0
    %v258 = vadd.f32 %v201, %v257
    %v259 = vand.u32 %v70, 4294901760
    %v260 = vsub.f32 %v70, %v259
    %261 = vmatmul.f32.gmra.mxu0 %v260
    %v262 = vpop.f32.mrf.mxu0
    %v263 = vadd.f32 %v205, %v262
    %v264 = vand.u32 %v73, 4294901760
    %v265 = vsub.f32 %v73, %v264
    %266 = vmatmul.f32.gmra.mxu0 %v265
    %v267 = vpop.f32.mrf.mxu0
    %v268 = vadd.f32 %v209, %v267
    %269 = vdwg.mxu0
    %270 = vmatpush.msra.mxu0 0.0
    %271 = vmatpush.msra.mxu0 0.0
    %272 = vmatpush.msra.mxu0 0.0
    %273 = vmatpush.msra.mxu0 0.0
    %274 = vmatpush.msra.mxu0 0.0
    %275 = vmatpush.msra.mxu0 0.0
    %276 = vmatpush.msra.mxu0 0.0
    %277 = vmatpush.msra.mxu0 0.0
    %278 = vmatpush.msra.mxu0 0.0
    %279 = vmatpush.msra.mxu0 0.0
    %280 = vmatpush.msra.mxu0 0.0
    %281 = vmatpush.msra.mxu0 0.0
    %282 = vmatpush.msra.mxu0 0.0
    %283 = vmatpush.msra.mxu0 0.0
    %284 = vmatpush.msra.mxu0 0.0
    %v285 = vand.u32 %v41, 4294901760
    %286 = vmatpush.msra.mxu0 %v285
    %v287 = vand.u32 %v52, 4294901760
    %v288 = vsub.f32 %v52, %v287
    %v289 = vand.u32 %v288, 4294901760
    %290 = vmatmul.f32.gmra.mxu0 %v289
    %v291 = vpop.f32.mrf.mxu0
    %v292 = vadd.f32 %v233, %v291
    %v293 = vand.u32 %v55, 4294901760
    %v294 = vsub.f32 %v55, %v293
    %v295 = vand.u32 %v294, 4294901760
    %296 = vmatmul.f32.gmra.mxu0 %v295
    %v297 = vpop.f32.mrf.mxu0
    %v298 = vadd.f32 %v238, %v297
    %v299 = vand.u32 %v58, 4294901760
    %v300 = vsub.f32 %v58, %v299
    %v301 = vand.u32 %v300, 4294901760
    %302 = vmatmul.f32.gmra.mxu0 %v301
    %v303 = vpop.f32.mrf.mxu0
    %v304 = vadd.f32 %v243, %v303
    %v305 = vand.u32 %v61, 4294901760
    %v306 = vsub.f32 %v61, %v305
    %v307 = vand.u32 %v306, 4294901760
    %308 = vmatmul.f32.gmra.mxu0 %v307
    %v309 = vpop.f32.mrf.mxu0
    %v310 = vadd.f32 %v248, %v309
    %v311 = vand.u32 %v64, 4294901760
    %v312 = vsub.f32 %v64, %v311
    %v313 = vand.u32 %v312, 4294901760
    %314 = vmatmul.f32.gmra.mxu0 %v313
    %v315 = vpop.f32.mrf.mxu0
    %v316 = vadd.f32 %v253, %v315
    %v317 = vand.u32 %v67, 4294901760
    %v318 = vsub.f32 %v67, %v317
    %v319 = vand.u32 %v318, 4294901760
    %320 = vmatmul.f32.gmra.mxu0 %v319
    %v321 = vpop.f32.mrf.mxu0
    %v322 = vadd.f32 %v258, %v321
    %v323 = vand.u32 %v70, 4294901760
    %v324 = vsub.f32 %v70, %v323
    %v325 = vand.u32 %v324, 4294901760
    %326 = vmatmul.f32.gmra.mxu0 %v325
    %v327 = vpop.f32.mrf.mxu0
    %v328 = vadd.f32 %v263, %v327
    %v329 = vand.u32 %v73, 4294901760
    %v330 = vsub.f32 %v73, %v329
    %v331 = vand.u32 %v330, 4294901760
    %332 = vmatmul.f32.gmra.mxu0 %v331
    %v333 = vpop.f32.mrf.mxu0
    %v334 = vadd.f32 %v268, %v333
    %335 = vdwg.mxu0
    %336 = vmatpush.msra.mxu0 0.0
    %337 = vmatpush.msra.mxu0 0.0
    %338 = vmatpush.msra.mxu0 0.0
    %339 = vmatpush.msra.mxu0 0.0
    %340 = vmatpush.msra.mxu0 0.0
    %341 = vmatpush.msra.mxu0 0.0
    %342 = vmatpush.msra.mxu0 0.0
    %343 = vmatpush.msra.mxu0 0.0
    %344 = vmatpush.msra.mxu0 0.0
    %345 = vmatpush.msra.mxu0 0.0
    %346 = vmatpush.msra.mxu0 0.0
    %347 = vmatpush.msra.mxu0 0.0
    %348 = vmatpush.msra.mxu0 0.0
    %349 = vmatpush.msra.mxu0 0.0
    %350 = vmatpush.msra.mxu0 0.0
    %v351 = vand.u32 %v41, 4294901760
    %v352 = vsub.f32 %v41, %v351
    %v353 = vand.u32 %v352, 4294901760
    %354 = vmatpush.msra.mxu0 %v353
    %v355 = vand.u32 %v52, 4294901760
    %356 = vmatmul.f32.gmra.mxu0 %v355
    %v357 = vpop.f32.mrf.mxu0
    %v358 = vadd.f32 %v292, %v357
    %v359 = vand.u32 %v55, 4294901760
    %360 = vmatmul.f32.gmra.mxu0 %v359
    %v361 = vpop.f32.mrf.mxu0
    %v362 = vadd.f32 %v298, %v361
    %v363 = vand.u32 %v58, 4294901760
    %364 = vmatmul.f32.gmra.mxu0 %v363
    %v365 = vpop.f32.mrf.mxu0
    %v366 = vadd.f32 %v304, %v365
    %v367 = vand.u32 %v61, 4294901760
    %368 = vmatmul.f32.gmra.mxu0 %v367
    %v369 = vpop.f32.mrf.mxu0
    %v370 = vadd.f32 %v310, %v369
    %v371 = vand.u32 %v64, 4294901760
    %372 = vmatmul.f32.gmra.mxu0 %v371
    %v373 = vpop.f32.mrf.mxu0
    %v374 = vadd.f32 %v316, %v373
    %v375 = vand.u32 %v67, 4294901760
    %376 = vmatmul.f32.gmra.mxu0 %v375
    %v377 = vpop.f32.mrf.mxu0
    %v378 = vadd.f32 %v322, %v377
    %v379 = vand.u32 %v70, 4294901760
    %380 = vmatmul.f32.gmra.mxu0 %v379
    %v381 = vpop.f32.mrf.mxu0
    %v382 = vadd.f32 %v328, %v381
    %v383 = vand.u32 %v73, 4294901760
    %384 = vmatmul.f32.gmra.mxu0 %v383
    %v385 = vpop.f32.mrf.mxu0
    %v386 = vadd.f32 %v334, %v385
    %387 = vdwg.mxu0
    %388 = vmatpush.msra.mxu0 0.0
    %389 = vmatpush.msra.mxu0 0.0
    %390 = vmatpush.msra.mxu0 0.0
    %391 = vmatpush.msra.mxu0 0.0
    %392 = vmatpush.msra.mxu0 0.0
    %393 = vmatpush.msra.mxu0 0.0
    %394 = vmatpush.msra.mxu0 0.0
    %395 = vmatpush.msra.mxu0 0.0
    %396 = vmatpush.msra.mxu0 0.0
    %397 = vmatpush.msra.mxu0 0.0
    %398 = vmatpush.msra.mxu0 0.0
    %399 = vmatpush.msra.mxu0 0.0
    %400 = vmatpush.msra.mxu0 0.0
    %401 = vmatpush.msra.mxu0 0.0
    %402 = vmatpush.msra.mxu0 0.0
    %v403 = vand.u32 %v41, 4294901760
    %404 = vmatpush.msra.mxu0 %v403
    %v405 = vand.u32 %v52, 4294901760
    %406 = vmatmul.f32.gmra.mxu0 %v405
    %v407 = vpop.f32.mrf.mxu0
    %v408 = vadd.f32 %v358, %v407
    %v409 = vand.u32 %v55, 4294901760
    %410 = vmatmul.f32.gmra.mxu0 %v409
    %v411 = vpop.f32.mrf.mxu0
    %v412 = vadd.f32 %v362, %v411
    %v413 = vand.u32 %v58, 4294901760
    %414 = vmatmul.f32.gmra.mxu0 %v413
    %v415 = vpop.f32.mrf.mxu0
    %v416 = vadd.f32 %v366, %v415
    %v417 = vand.u32 %v61, 4294901760
    %418 = vmatmul.f32.gmra.mxu0 %v417
    %v419 = vpop.f32.mrf.mxu0
    %v420 = vadd.f32 %v370, %v419
    %v421 = vand.u32 %v64, 4294901760
    %422 = vmatmul.f32.gmra.mxu0 %v421
    %v423 = vpop.f32.mrf.mxu0
    %v424 = vadd.f32 %v374, %v423
    %v425 = vand.u32 %v67, 4294901760
    %426 = vmatmul.f32.gmra.mxu0 %v425
    %v427 = vpop.f32.mrf.mxu0
    %v428 = vadd.f32 %v378, %v427
    %v429 = vand.u32 %v70, 4294901760
    %430 = vmatmul.f32.gmra.mxu0 %v429
    %v431 = vpop.f32.mrf.mxu0
    %v432 = vadd.f32 %v382, %v431
    %v433 = vand.u32 %v73, 4294901760
    %434 = vmatmul.f32.gmra.mxu0 %v433
    %v435 = vpop.f32.mrf.mxu0
    %v436 = vadd.f32 %v386, %v435
    %437 = vdwg.mxu0
    %v438 = vld [vmem:[%s0 + $0x1] sm:$0x1]
    %v439 = vmul.f32 %v438, 1.5
    %v440 = vmul.f32 %v439, %v438
    %v441 = vsub.f32 %v440, 0.5
    %v442 = vmul.f32 %v438, 1.6666666
    %v443 = vmul.f32 %v442, %v441
    %v444 = vmul.f32 %v438, 0.6666667
    %v445 = vsub.f32 %v443, %v444
    %v447 = vrot.slane %v438, 7
    %v450 = vrot.slane %v441, 6
    %v453 = vrot.slane %v445, 5
    %v455 = vsel %vm34, 1.0, %v447
    %v456 = vsel %vm36, %v455, %v450
    %v457 = vsel %vm38, %v456, %v453
    %v458 = vsel %vm40, %v457, 0.0
    %s459 = scalar_lea.vmem %s1, 64
    %v460 = vld [vmem:[%s459] sm:$0xff]
    %v461 = vld [vmem:[%s459 + $0x8] sm:$0xff]
    %v462 = vld [vmem:[%s459 + $0x10] sm:$0xff]
    %v463 = vld [vmem:[%s459 + $0x18] sm:$0xff]
    %v464 = vld [vmem:[%s459 + $0x20] sm:$0xff]
    %v465 = vld [vmem:[%s459 + $0x28] sm:$0xff]
    %v466 = vld [vmem:[%s459 + $0x30] sm:$0xff]
    %v467 = vld [vmem:[%s459 + $0x38] sm:$0xff]
    %v469 = vsel %vm50, %v460, 0
    %v472 = vsel %vm50, %v461, 0
    %v475 = vsel %vm50, %v462, 0
    %v478 = vsel %vm50, %v463, 0
    %v481 = vsel %vm50, %v464, 0
    %v484 = vsel %vm50, %v465, 0
    %v487 = vsel %vm50, %v466, 0
    %v490 = vsel %vm50, %v467, 0
    %492 = vmatpush.msra.mxu0 0.0
    %493 = vmatpush.msra.mxu0 0.0
    %494 = vmatpush.msra.mxu0 0.0
    %495 = vmatpush.msra.mxu0 0.0
    %496 = vmatpush.msra.mxu0 0.0
    %497 = vmatpush.msra.mxu0 0.0
    %498 = vmatpush.msra.mxu0 0.0
    %499 = vmatpush.msra.mxu0 0.0
    %500 = vmatpush.msra.mxu0 0.0
    %501 = vmatpush.msra.mxu0 0.0
    %502 = vmatpush.msra.mxu0 0.0
    %503 = vmatpush.msra.mxu0 0.0
    %504 = vmatpush.msra.mxu0 0.0
    %505 = vmatpush.msra.mxu0 0.0
    %506 = vmatpush.msra.mxu0 0.0
    %v507 = vand.u32 %v458, 4294901760
    %508 = vmatpush.msra.mxu0 %v507
    %v509 = vand.u32 %v469, 4294901760
    %v510 = vsub.f32 %v469, %v509
    %v511 = vand.u32 %v510, 4294901760
    %v512 = vsub.f32 %v510, %v511
    %v513 = vand.u32 %v512, 4294901760
    %514 = vmatmul.f32.gmra.mxu0 %v513
    %v515 = vpop.f32.mrf.mxu0
    %v516 = vadd.f32 0.0, %v515
    %v517 = vand.u32 %v472, 4294901760
    %v518 = vsub.f32 %v472, %v517
    %v519 = vand.u32 %v518, 4294901760
    %v520 = vsub.f32 %v518, %v519
    %v521 = vand.u32 %v520, 4294901760
    %522 = vmatmul.f32.gmra.mxu0 %v521
    %v523 = vpop.f32.mrf.mxu0
    %v524 = vadd.f32 0.0, %v523
    %v525 = vand.u32 %v475, 4294901760
    %v526 = vsub.f32 %v475, %v525
    %v527 = vand.u32 %v526, 4294901760
    %v528 = vsub.f32 %v526, %v527
    %v529 = vand.u32 %v528, 4294901760
    %530 = vmatmul.f32.gmra.mxu0 %v529
    %v531 = vpop.f32.mrf.mxu0
    %v532 = vadd.f32 0.0, %v531
    %v533 = vand.u32 %v478, 4294901760
    %v534 = vsub.f32 %v478, %v533
    %v535 = vand.u32 %v534, 4294901760
    %v536 = vsub.f32 %v534, %v535
    %v537 = vand.u32 %v536, 4294901760
    %538 = vmatmul.f32.gmra.mxu0 %v537
    %v539 = vpop.f32.mrf.mxu0
    %v540 = vadd.f32 0.0, %v539
    %v541 = vand.u32 %v481, 4294901760
    %v542 = vsub.f32 %v481, %v541
    %v543 = vand.u32 %v542, 4294901760
    %v544 = vsub.f32 %v542, %v543
    %v545 = vand.u32 %v544, 4294901760
    %546 = vmatmul.f32.gmra.mxu0 %v545
    %v547 = vpop.f32.mrf.mxu0
    %v548 = vadd.f32 0.0, %v547
    %v549 = vand.u32 %v484, 4294901760
    %v550 = vsub.f32 %v484, %v549
    %v551 = vand.u32 %v550, 4294901760
    %v552 = vsub.f32 %v550, %v551
    %v553 = vand.u32 %v552, 4294901760
    %554 = vmatmul.f32.gmra.mxu0 %v553
    %v555 = vpop.f32.mrf.mxu0
    %v556 = vadd.f32 0.0, %v555
    %v557 = vand.u32 %v487, 4294901760
    %v558 = vsub.f32 %v487, %v557
    %v559 = vand.u32 %v558, 4294901760
    %v560 = vsub.f32 %v558, %v559
    %v561 = vand.u32 %v560, 4294901760
    %562 = vmatmul.f32.gmra.mxu0 %v561
    %v563 = vpop.f32.mrf.mxu0
    %v564 = vadd.f32 0.0, %v563
    %v565 = vand.u32 %v490, 4294901760
    %v566 = vsub.f32 %v490, %v565
    %v567 = vand.u32 %v566, 4294901760
    %v568 = vsub.f32 %v566, %v567
    %v569 = vand.u32 %v568, 4294901760
    %570 = vmatmul.f32.gmra.mxu0 %v569
    %v571 = vpop.f32.mrf.mxu0
    %v572 = vadd.f32 0.0, %v571
    %573 = vdwg.mxu0
    %574 = vmatpush.msra.mxu0 0.0
    %575 = vmatpush.msra.mxu0 0.0
    %576 = vmatpush.msra.mxu0 0.0
    %577 = vmatpush.msra.mxu0 0.0
    %578 = vmatpush.msra.mxu0 0.0
    %579 = vmatpush.msra.mxu0 0.0
    %580 = vmatpush.msra.mxu0 0.0
    %581 = vmatpush.msra.mxu0 0.0
    %582 = vmatpush.msra.mxu0 0.0
    %583 = vmatpush.msra.mxu0 0.0
    %584 = vmatpush.msra.mxu0 0.0
    %585 = vmatpush.msra.mxu0 0.0
    %586 = vmatpush.msra.mxu0 0.0
    %587 = vmatpush.msra.mxu0 0.0
    %588 = vmatpush.msra.mxu0 0.0
    %v589 = vand.u32 %v458, 4294901760
    %v590 = vsub.f32 %v458, %v589
    %v591 = vand.u32 %v590, 4294901760
    %v592 = vsub.f32 %v590, %v591
    %v593 = vand.u32 %v592, 4294901760
    %594 = vmatpush.msra.mxu0 %v593
    %v595 = vand.u32 %v469, 4294901760
    %596 = vmatmul.f32.gmra.mxu0 %v595
    %v597 = vpop.f32.mrf.mxu0
    %v598 = vadd.f32 %v516, %v597
    %v599 = vand.u32 %v472, 4294901760
    %600 = vmatmul.f32.gmra.mxu0 %v599
    %v601 = vpop.f32.mrf.mxu0
    %v602 = vadd.f32 %v524, %v601
    %v603 = vand.u32 %v475, 4294901760
    %604 = vmatmul.f32.gmra.mxu0 %v603
    %v605 = vpop.f32.mrf.mxu0
    %v606 = vadd.f32 %v532, %v605
    %v607 = vand.u32 %v478, 4294901760
    %608 = vmatmul.f32.gmra.mxu0 %v607
    %v609 = vpop.f32.mrf.mxu0
    %v610 = vadd.f32 %v540, %v609
    %v611 = vand.u32 %v481, 4294901760
    %612 = vmatmul.f32.gmra.mxu0 %v611
    %v613 = vpop.f32.mrf.mxu0
    %v614 = vadd.f32 %v548, %v613
    %v615 = vand.u32 %v484, 4294901760
    %616 = vmatmul.f32.gmra.mxu0 %v615
    %v617 = vpop.f32.mrf.mxu0
    %v618 = vadd.f32 %v556, %v617
    %v619 = vand.u32 %v487, 4294901760
    %620 = vmatmul.f32.gmra.mxu0 %v619
    %v621 = vpop.f32.mrf.mxu0
    %v622 = vadd.f32 %v564, %v621
    %v623 = vand.u32 %v490, 4294901760
    %624 = vmatmul.f32.gmra.mxu0 %v623
    %v625 = vpop.f32.mrf.mxu0
    %v626 = vadd.f32 %v572, %v625
    %627 = vdwg.mxu0
    %628 = vmatpush.msra.mxu0 0.0
    %629 = vmatpush.msra.mxu0 0.0
    %630 = vmatpush.msra.mxu0 0.0
    %631 = vmatpush.msra.mxu0 0.0
    %632 = vmatpush.msra.mxu0 0.0
    %633 = vmatpush.msra.mxu0 0.0
    %634 = vmatpush.msra.mxu0 0.0
    %635 = vmatpush.msra.mxu0 0.0
    %636 = vmatpush.msra.mxu0 0.0
    %637 = vmatpush.msra.mxu0 0.0
    %638 = vmatpush.msra.mxu0 0.0
    %639 = vmatpush.msra.mxu0 0.0
    %640 = vmatpush.msra.mxu0 0.0
    %641 = vmatpush.msra.mxu0 0.0
    %642 = vmatpush.msra.mxu0 0.0
    %v643 = vand.u32 %v458, 4294901760
    %v644 = vsub.f32 %v458, %v643
    %645 = vmatpush.msra.mxu0 %v644
    %v646 = vand.u32 %v469, 4294901760
    %v647 = vsub.f32 %v469, %v646
    %648 = vmatmul.f32.gmra.mxu0 %v647
    %v649 = vpop.f32.mrf.mxu0
    %v650 = vadd.f32 %v598, %v649
    %v651 = vand.u32 %v472, 4294901760
    %v652 = vsub.f32 %v472, %v651
    %653 = vmatmul.f32.gmra.mxu0 %v652
    %v654 = vpop.f32.mrf.mxu0
    %v655 = vadd.f32 %v602, %v654
    %v656 = vand.u32 %v475, 4294901760
    %v657 = vsub.f32 %v475, %v656
    %658 = vmatmul.f32.gmra.mxu0 %v657
    %v659 = vpop.f32.mrf.mxu0
    %v660 = vadd.f32 %v606, %v659
    %v661 = vand.u32 %v478, 4294901760
    %v662 = vsub.f32 %v478, %v661
    %663 = vmatmul.f32.gmra.mxu0 %v662
    %v664 = vpop.f32.mrf.mxu0
    %v665 = vadd.f32 %v610, %v664
    %v666 = vand.u32 %v481, 4294901760
    %v667 = vsub.f32 %v481, %v666
    %668 = vmatmul.f32.gmra.mxu0 %v667
    %v669 = vpop.f32.mrf.mxu0
    %v670 = vadd.f32 %v614, %v669
    %v671 = vand.u32 %v484, 4294901760
    %v672 = vsub.f32 %v484, %v671
    %673 = vmatmul.f32.gmra.mxu0 %v672
    %v674 = vpop.f32.mrf.mxu0
    %v675 = vadd.f32 %v618, %v674
    %v676 = vand.u32 %v487, 4294901760
    %v677 = vsub.f32 %v487, %v676
    %678 = vmatmul.f32.gmra.mxu0 %v677
    %v679 = vpop.f32.mrf.mxu0
    %v680 = vadd.f32 %v622, %v679
    %v681 = vand.u32 %v490, 4294901760
    %v682 = vsub.f32 %v490, %v681
    %683 = vmatmul.f32.gmra.mxu0 %v682
    %v684 = vpop.f32.mrf.mxu0
    %v685 = vadd.f32 %v626, %v684
    %686 = vdwg.mxu0
    %687 = vmatpush.msra.mxu0 0.0
    %688 = vmatpush.msra.mxu0 0.0
    %689 = vmatpush.msra.mxu0 0.0
    %690 = vmatpush.msra.mxu0 0.0
    %691 = vmatpush.msra.mxu0 0.0
    %692 = vmatpush.msra.mxu0 0.0
    %693 = vmatpush.msra.mxu0 0.0
    %694 = vmatpush.msra.mxu0 0.0
    %695 = vmatpush.msra.mxu0 0.0
    %696 = vmatpush.msra.mxu0 0.0
    %697 = vmatpush.msra.mxu0 0.0
    %698 = vmatpush.msra.mxu0 0.0
    %699 = vmatpush.msra.mxu0 0.0
    %700 = vmatpush.msra.mxu0 0.0
    %701 = vmatpush.msra.mxu0 0.0
    %v702 = vand.u32 %v458, 4294901760
    %703 = vmatpush.msra.mxu0 %v702
    %v704 = vand.u32 %v469, 4294901760
    %v705 = vsub.f32 %v469, %v704
    %v706 = vand.u32 %v705, 4294901760
    %707 = vmatmul.f32.gmra.mxu0 %v706
    %v708 = vpop.f32.mrf.mxu0
    %v709 = vadd.f32 %v650, %v708
    %v710 = vand.u32 %v472, 4294901760
    %v711 = vsub.f32 %v472, %v710
    %v712 = vand.u32 %v711, 4294901760
    %713 = vmatmul.f32.gmra.mxu0 %v712
    %v714 = vpop.f32.mrf.mxu0
    %v715 = vadd.f32 %v655, %v714
    %v716 = vand.u32 %v475, 4294901760
    %v717 = vsub.f32 %v475, %v716
    %v718 = vand.u32 %v717, 4294901760
    %719 = vmatmul.f32.gmra.mxu0 %v718
    %v720 = vpop.f32.mrf.mxu0
    %v721 = vadd.f32 %v660, %v720
    %v722 = vand.u32 %v478, 4294901760
    %v723 = vsub.f32 %v478, %v722
    %v724 = vand.u32 %v723, 4294901760
    %725 = vmatmul.f32.gmra.mxu0 %v724
    %v726 = vpop.f32.mrf.mxu0
    %v727 = vadd.f32 %v665, %v726
    %v728 = vand.u32 %v481, 4294901760
    %v729 = vsub.f32 %v481, %v728
    %v730 = vand.u32 %v729, 4294901760
    %731 = vmatmul.f32.gmra.mxu0 %v730
    %v732 = vpop.f32.mrf.mxu0
    %v733 = vadd.f32 %v670, %v732
    %v734 = vand.u32 %v484, 4294901760
    %v735 = vsub.f32 %v484, %v734
    %v736 = vand.u32 %v735, 4294901760
    %737 = vmatmul.f32.gmra.mxu0 %v736
    %v738 = vpop.f32.mrf.mxu0
    %v739 = vadd.f32 %v675, %v738
    %v740 = vand.u32 %v487, 4294901760
    %v741 = vsub.f32 %v487, %v740
    %v742 = vand.u32 %v741, 4294901760
    %743 = vmatmul.f32.gmra.mxu0 %v742
    %v744 = vpop.f32.mrf.mxu0
    %v745 = vadd.f32 %v680, %v744
    %v746 = vand.u32 %v490, 4294901760
    %v747 = vsub.f32 %v490, %v746
    %v748 = vand.u32 %v747, 4294901760
    %749 = vmatmul.f32.gmra.mxu0 %v748
    %v750 = vpop.f32.mrf.mxu0
    %v751 = vadd.f32 %v685, %v750
    %752 = vdwg.mxu0
    %753 = vmatpush.msra.mxu0 0.0
    %754 = vmatpush.msra.mxu0 0.0
    %755 = vmatpush.msra.mxu0 0.0
    %756 = vmatpush.msra.mxu0 0.0
    %757 = vmatpush.msra.mxu0 0.0
    %758 = vmatpush.msra.mxu0 0.0
    %759 = vmatpush.msra.mxu0 0.0
    %760 = vmatpush.msra.mxu0 0.0
    %761 = vmatpush.msra.mxu0 0.0
    %762 = vmatpush.msra.mxu0 0.0
    %763 = vmatpush.msra.mxu0 0.0
    %764 = vmatpush.msra.mxu0 0.0
    %765 = vmatpush.msra.mxu0 0.0
    %766 = vmatpush.msra.mxu0 0.0
    %767 = vmatpush.msra.mxu0 0.0
    %v768 = vand.u32 %v458, 4294901760
    %v769 = vsub.f32 %v458, %v768
    %v770 = vand.u32 %v769, 4294901760
    %771 = vmatpush.msra.mxu0 %v770
    %v772 = vand.u32 %v469, 4294901760
    %773 = vmatmul.f32.gmra.mxu0 %v772
    %v774 = vpop.f32.mrf.mxu0
    %v775 = vadd.f32 %v709, %v774
    %v776 = vand.u32 %v472, 4294901760
    %777 = vmatmul.f32.gmra.mxu0 %v776
    %v778 = vpop.f32.mrf.mxu0
    %v779 = vadd.f32 %v715, %v778
    %v780 = vand.u32 %v475, 4294901760
    %781 = vmatmul.f32.gmra.mxu0 %v780
    %v782 = vpop.f32.mrf.mxu0
    %v783 = vadd.f32 %v721, %v782
    %v784 = vand.u32 %v478, 4294901760
    %785 = vmatmul.f32.gmra.mxu0 %v784
    %v786 = vpop.f32.mrf.mxu0
    %v787 = vadd.f32 %v727, %v786
    %v788 = vand.u32 %v481, 4294901760
    %789 = vmatmul.f32.gmra.mxu0 %v788
    %v790 = vpop.f32.mrf.mxu0
    %v791 = vadd.f32 %v733, %v790
    %v792 = vand.u32 %v484, 4294901760
    %793 = vmatmul.f32.gmra.mxu0 %v792
    %v794 = vpop.f32.mrf.mxu0
    %v795 = vadd.f32 %v739, %v794
    %v796 = vand.u32 %v487, 4294901760
    %797 = vmatmul.f32.gmra.mxu0 %v796
    %v798 = vpop.f32.mrf.mxu0
    %v799 = vadd.f32 %v745, %v798
    %v800 = vand.u32 %v490, 4294901760
    %801 = vmatmul.f32.gmra.mxu0 %v800
    %v802 = vpop.f32.mrf.mxu0
    %v803 = vadd.f32 %v751, %v802
    %804 = vdwg.mxu0
    %805 = vmatpush.msra.mxu0 0.0
    %806 = vmatpush.msra.mxu0 0.0
    %807 = vmatpush.msra.mxu0 0.0
    %808 = vmatpush.msra.mxu0 0.0
    %809 = vmatpush.msra.mxu0 0.0
    %810 = vmatpush.msra.mxu0 0.0
    %811 = vmatpush.msra.mxu0 0.0
    %812 = vmatpush.msra.mxu0 0.0
    %813 = vmatpush.msra.mxu0 0.0
    %814 = vmatpush.msra.mxu0 0.0
    %815 = vmatpush.msra.mxu0 0.0
    %816 = vmatpush.msra.mxu0 0.0
    %817 = vmatpush.msra.mxu0 0.0
    %818 = vmatpush.msra.mxu0 0.0
    %819 = vmatpush.msra.mxu0 0.0
    %v820 = vand.u32 %v458, 4294901760
    %821 = vmatpush.msra.mxu0 %v820
    %v822 = vand.u32 %v469, 4294901760
    %823 = vmatmul.f32.gmra.mxu0 %v822
    %v824 = vpop.f32.mrf.mxu0
    %v825 = vadd.f32 %v775, %v824
    %v826 = vand.u32 %v472, 4294901760
    %827 = vmatmul.f32.gmra.mxu0 %v826
    %v828 = vpop.f32.mrf.mxu0
    %v829 = vadd.f32 %v779, %v828
    %v830 = vand.u32 %v475, 4294901760
    %831 = vmatmul.f32.gmra.mxu0 %v830
    %v832 = vpop.f32.mrf.mxu0
    %v833 = vadd.f32 %v783, %v832
    %v834 = vand.u32 %v478, 4294901760
    %835 = vmatmul.f32.gmra.mxu0 %v834
    %v836 = vpop.f32.mrf.mxu0
    %v837 = vadd.f32 %v787, %v836
    %v838 = vand.u32 %v481, 4294901760
    %839 = vmatmul.f32.gmra.mxu0 %v838
    %v840 = vpop.f32.mrf.mxu0
    %v841 = vadd.f32 %v791, %v840
    %v842 = vand.u32 %v484, 4294901760
    %843 = vmatmul.f32.gmra.mxu0 %v842
    %v844 = vpop.f32.mrf.mxu0
    %v845 = vadd.f32 %v795, %v844
    %v846 = vand.u32 %v487, 4294901760
    %847 = vmatmul.f32.gmra.mxu0 %v846
    %v848 = vpop.f32.mrf.mxu0
    %v849 = vadd.f32 %v799, %v848
    %v850 = vand.u32 %v490, 4294901760
    %851 = vmatmul.f32.gmra.mxu0 %v850
    %v852 = vpop.f32.mrf.mxu0
    %v853 = vadd.f32 %v803, %v852
    %854 = vdwg.mxu0
    %v855 = vmul.f32 %v408, %v825
    %v856 = vmul.f32 %v412, %v829
    %v857 = vmul.f32 %v416, %v833
    %v858 = vmul.f32 %v420, %v837
    %v859 = vmul.f32 %v424, %v841
    %v860 = vmul.f32 %v428, %v845
    %v861 = vmul.f32 %v432, %v849
    %v862 = vmul.f32 %v436, %v853
    %v863 = vld [vmem:[%s0 + $0x2] sm:$0x1]
    %v864 = vmul.f32 %v863, 1.5
    %v865 = vmul.f32 %v864, %v863
    %v866 = vsub.f32 %v865, 0.5
    %v867 = vmul.f32 %v863, 1.6666666
    %v868 = vmul.f32 %v867, %v866
    %v869 = vmul.f32 %v863, 0.6666667
    %v870 = vsub.f32 %v868, %v869
    %v872 = vrot.slane %v863, 7
    %v875 = vrot.slane %v866, 6
    %v878 = vrot.slane %v870, 5
    %v880 = vsel %vm34, 1.0, %v872
    %v881 = vsel %vm36, %v880, %v875
    %v882 = vsel %vm38, %v881, %v878
    %v883 = vsel %vm40, %v882, 0.0
    %s884 = scalar_lea.vmem %s1, 128
    %v885 = vld [vmem:[%s884] sm:$0xff]
    %v886 = vld [vmem:[%s884 + $0x8] sm:$0xff]
    %v887 = vld [vmem:[%s884 + $0x10] sm:$0xff]
    %v888 = vld [vmem:[%s884 + $0x18] sm:$0xff]
    %v889 = vld [vmem:[%s884 + $0x20] sm:$0xff]
    %v890 = vld [vmem:[%s884 + $0x28] sm:$0xff]
    %v891 = vld [vmem:[%s884 + $0x30] sm:$0xff]
    %v892 = vld [vmem:[%s884 + $0x38] sm:$0xff]
    %v894 = vsel %vm50, %v885, 0
    %v897 = vsel %vm50, %v886, 0
    %v900 = vsel %vm50, %v887, 0
    %v903 = vsel %vm50, %v888, 0
    %v906 = vsel %vm50, %v889, 0
    %v909 = vsel %vm50, %v890, 0
    %v912 = vsel %vm50, %v891, 0
    %v915 = vsel %vm50, %v892, 0
    %917 = vmatpush.msra.mxu0 0.0
    %918 = vmatpush.msra.mxu0 0.0
    %919 = vmatpush.msra.mxu0 0.0
    %920 = vmatpush.msra.mxu0 0.0
    %921 = vmatpush.msra.mxu0 0.0
    %922 = vmatpush.msra.mxu0 0.0
    %923 = vmatpush.msra.mxu0 0.0
    %924 = vmatpush.msra.mxu0 0.0
    %925 = vmatpush.msra.mxu0 0.0
    %926 = vmatpush.msra.mxu0 0.0
    %927 = vmatpush.msra.mxu0 0.0
    %928 = vmatpush.msra.mxu0 0.0
    %929 = vmatpush.msra.mxu0 0.0
    %930 = vmatpush.msra.mxu0 0.0
    %931 = vmatpush.msra.mxu0 0.0
    %v932 = vand.u32 %v883, 4294901760
    %933 = vmatpush.msra.mxu0 %v932
    %v934 = vand.u32 %v894, 4294901760
    %v935 = vsub.f32 %v894, %v934
    %v936 = vand.u32 %v935, 4294901760
    %v937 = vsub.f32 %v935, %v936
    %v938 = vand.u32 %v937, 4294901760
    %939 = vmatmul.f32.gmra.mxu0 %v938
    %v940 = vpop.f32.mrf.mxu0
    %v941 = vadd.f32 0.0, %v940
    %v942 = vand.u32 %v897, 4294901760
    %v943 = vsub.f32 %v897, %v942
    %v944 = vand.u32 %v943, 4294901760
    %v945 = vsub.f32 %v943, %v944
    %v946 = vand.u32 %v945, 4294901760
    %947 = vmatmul.f32.gmra.mxu0 %v946
    %v948 = vpop.f32.mrf.mxu0
    %v949 = vadd.f32 0.0, %v948
    %v950 = vand.u32 %v900, 4294901760
    %v951 = vsub.f32 %v900, %v950
    %v952 = vand.u32 %v951, 4294901760
    %v953 = vsub.f32 %v951, %v952
    %v954 = vand.u32 %v953, 4294901760
    %955 = vmatmul.f32.gmra.mxu0 %v954
    %v956 = vpop.f32.mrf.mxu0
    %v957 = vadd.f32 0.0, %v956
    %v958 = vand.u32 %v903, 4294901760
    %v959 = vsub.f32 %v903, %v958
    %v960 = vand.u32 %v959, 4294901760
    %v961 = vsub.f32 %v959, %v960
    %v962 = vand.u32 %v961, 4294901760
    %963 = vmatmul.f32.gmra.mxu0 %v962
    %v964 = vpop.f32.mrf.mxu0
    %v965 = vadd.f32 0.0, %v964
    %v966 = vand.u32 %v906, 4294901760
    %v967 = vsub.f32 %v906, %v966
    %v968 = vand.u32 %v967, 4294901760
    %v969 = vsub.f32 %v967, %v968
    %v970 = vand.u32 %v969, 4294901760
    %971 = vmatmul.f32.gmra.mxu0 %v970
    %v972 = vpop.f32.mrf.mxu0
    %v973 = vadd.f32 0.0, %v972
    %v974 = vand.u32 %v909, 4294901760
    %v975 = vsub.f32 %v909, %v974
    %v976 = vand.u32 %v975, 4294901760
    %v977 = vsub.f32 %v975, %v976
    %v978 = vand.u32 %v977, 4294901760
    %979 = vmatmul.f32.gmra.mxu0 %v978
    %v980 = vpop.f32.mrf.mxu0
    %v981 = vadd.f32 0.0, %v980
    %v982 = vand.u32 %v912, 4294901760
    %v983 = vsub.f32 %v912, %v982
    %v984 = vand.u32 %v983, 4294901760
    %v985 = vsub.f32 %v983, %v984
    %v986 = vand.u32 %v985, 4294901760
    %987 = vmatmul.f32.gmra.mxu0 %v986
    %v988 = vpop.f32.mrf.mxu0
    %v989 = vadd.f32 0.0, %v988
    %v990 = vand.u32 %v915, 4294901760
    %v991 = vsub.f32 %v915, %v990
    %v992 = vand.u32 %v991, 4294901760
    %v993 = vsub.f32 %v991, %v992
    %v994 = vand.u32 %v993, 4294901760
    %995 = vmatmul.f32.gmra.mxu0 %v994
    %v996 = vpop.f32.mrf.mxu0
    %v997 = vadd.f32 0.0, %v996
    %998 = vdwg.mxu0
    %999 = vmatpush.msra.mxu0 0.0
    %1000 = vmatpush.msra.mxu0 0.0
    %1001 = vmatpush.msra.mxu0 0.0
    %1002 = vmatpush.msra.mxu0 0.0
    %1003 = vmatpush.msra.mxu0 0.0
    %1004 = vmatpush.msra.mxu0 0.0
    %1005 = vmatpush.msra.mxu0 0.0
    %1006 = vmatpush.msra.mxu0 0.0
    %1007 = vmatpush.msra.mxu0 0.0
    %1008 = vmatpush.msra.mxu0 0.0
    %1009 = vmatpush.msra.mxu0 0.0
    %1010 = vmatpush.msra.mxu0 0.0
    %1011 = vmatpush.msra.mxu0 0.0
    %1012 = vmatpush.msra.mxu0 0.0
    %1013 = vmatpush.msra.mxu0 0.0
    %v1014 = vand.u32 %v883, 4294901760
    %v1015 = vsub.f32 %v883, %v1014
    %v1016 = vand.u32 %v1015, 4294901760
    %v1017 = vsub.f32 %v1015, %v1016
    %v1018 = vand.u32 %v1017, 4294901760
    %1019 = vmatpush.msra.mxu0 %v1018
    %v1020 = vand.u32 %v894, 4294901760
    %1021 = vmatmul.f32.gmra.mxu0 %v1020
    %v1022 = vpop.f32.mrf.mxu0
    %v1023 = vadd.f32 %v941, %v1022
    %v1024 = vand.u32 %v897, 4294901760
    %1025 = vmatmul.f32.gmra.mxu0 %v1024
    %v1026 = vpop.f32.mrf.mxu0
    %v1027 = vadd.f32 %v949, %v1026
    %v1028 = vand.u32 %v900, 4294901760
    %1029 = vmatmul.f32.gmra.mxu0 %v1028
    %v1030 = vpop.f32.mrf.mxu0
    %v1031 = vadd.f32 %v957, %v1030
    %v1032 = vand.u32 %v903, 4294901760
    %1033 = vmatmul.f32.gmra.mxu0 %v1032
    %v1034 = vpop.f32.mrf.mxu0
    %v1035 = vadd.f32 %v965, %v1034
    %v1036 = vand.u32 %v906, 4294901760
    %1037 = vmatmul.f32.gmra.mxu0 %v1036
    %v1038 = vpop.f32.mrf.mxu0
    %v1039 = vadd.f32 %v973, %v1038
    %v1040 = vand.u32 %v909, 4294901760
    %1041 = vmatmul.f32.gmra.mxu0 %v1040
    %v1042 = vpop.f32.mrf.mxu0
    %v1043 = vadd.f32 %v981, %v1042
    %v1044 = vand.u32 %v912, 4294901760
    %1045 = vmatmul.f32.gmra.mxu0 %v1044
    %v1046 = vpop.f32.mrf.mxu0
    %v1047 = vadd.f32 %v989, %v1046
    %v1048 = vand.u32 %v915, 4294901760
    %1049 = vmatmul.f32.gmra.mxu0 %v1048
    %v1050 = vpop.f32.mrf.mxu0
    %v1051 = vadd.f32 %v997, %v1050
    %1052 = vdwg.mxu0
    %1053 = vmatpush.msra.mxu0 0.0
    %1054 = vmatpush.msra.mxu0 0.0
    %1055 = vmatpush.msra.mxu0 0.0
    %1056 = vmatpush.msra.mxu0 0.0
    %1057 = vmatpush.msra.mxu0 0.0
    %1058 = vmatpush.msra.mxu0 0.0
    %1059 = vmatpush.msra.mxu0 0.0
    %1060 = vmatpush.msra.mxu0 0.0
    %1061 = vmatpush.msra.mxu0 0.0
    %1062 = vmatpush.msra.mxu0 0.0
    %1063 = vmatpush.msra.mxu0 0.0
    %1064 = vmatpush.msra.mxu0 0.0
    %1065 = vmatpush.msra.mxu0 0.0
    %1066 = vmatpush.msra.mxu0 0.0
    %1067 = vmatpush.msra.mxu0 0.0
    %v1068 = vand.u32 %v883, 4294901760
    %v1069 = vsub.f32 %v883, %v1068
    %1070 = vmatpush.msra.mxu0 %v1069
    %v1071 = vand.u32 %v894, 4294901760
    %v1072 = vsub.f32 %v894, %v1071
    %1073 = vmatmul.f32.gmra.mxu0 %v1072
    %v1074 = vpop.f32.mrf.mxu0
    %v1075 = vadd.f32 %v1023, %v1074
    %v1076 = vand.u32 %v897, 4294901760
    %v1077 = vsub.f32 %v897, %v1076
    %1078 = vmatmul.f32.gmra.mxu0 %v1077
    %v1079 = vpop.f32.mrf.mxu0
    %v1080 = vadd.f32 %v1027, %v1079
    %v1081 = vand.u32 %v900, 4294901760
    %v1082 = vsub.f32 %v900, %v1081
    %1083 = vmatmul.f32.gmra.mxu0 %v1082
    %v1084 = vpop.f32.mrf.mxu0
    %v1085 = vadd.f32 %v1031, %v1084
    %v1086 = vand.u32 %v903, 4294901760
    %v1087 = vsub.f32 %v903, %v1086
    %1088 = vmatmul.f32.gmra.mxu0 %v1087
    %v1089 = vpop.f32.mrf.mxu0
    %v1090 = vadd.f32 %v1035, %v1089
    %v1091 = vand.u32 %v906, 4294901760
    %v1092 = vsub.f32 %v906, %v1091
    %1093 = vmatmul.f32.gmra.mxu0 %v1092
    %v1094 = vpop.f32.mrf.mxu0
    %v1095 = vadd.f32 %v1039, %v1094
    %v1096 = vand.u32 %v909, 4294901760
    %v1097 = vsub.f32 %v909, %v1096
    %1098 = vmatmul.f32.gmra.mxu0 %v1097
    %v1099 = vpop.f32.mrf.mxu0
    %v1100 = vadd.f32 %v1043, %v1099
    %v1101 = vand.u32 %v912, 4294901760
    %v1102 = vsub.f32 %v912, %v1101
    %1103 = vmatmul.f32.gmra.mxu0 %v1102
    %v1104 = vpop.f32.mrf.mxu0
    %v1105 = vadd.f32 %v1047, %v1104
    %v1106 = vand.u32 %v915, 4294901760
    %v1107 = vsub.f32 %v915, %v1106
    %1108 = vmatmul.f32.gmra.mxu0 %v1107
    %v1109 = vpop.f32.mrf.mxu0
    %v1110 = vadd.f32 %v1051, %v1109
    %1111 = vdwg.mxu0
    %1112 = vmatpush.msra.mxu0 0.0
    %1113 = vmatpush.msra.mxu0 0.0
    %1114 = vmatpush.msra.mxu0 0.0
    %1115 = vmatpush.msra.mxu0 0.0
    %1116 = vmatpush.msra.mxu0 0.0
    %1117 = vmatpush.msra.mxu0 0.0
    %1118 = vmatpush.msra.mxu0 0.0
    %1119 = vmatpush.msra.mxu0 0.0
    %1120 = vmatpush.msra.mxu0 0.0
    %1121 = vmatpush.msra.mxu0 0.0
    %1122 = vmatpush.msra.mxu0 0.0
    %1123 = vmatpush.msra.mxu0 0.0
    %1124 = vmatpush.msra.mxu0 0.0
    %1125 = vmatpush.msra.mxu0 0.0
    %1126 = vmatpush.msra.mxu0 0.0
    %v1127 = vand.u32 %v883, 4294901760
    %1128 = vmatpush.msra.mxu0 %v1127
    %v1129 = vand.u32 %v894, 4294901760
    %v1130 = vsub.f32 %v894, %v1129
    %v1131 = vand.u32 %v1130, 4294901760
    %1132 = vmatmul.f32.gmra.mxu0 %v1131
    %v1133 = vpop.f32.mrf.mxu0
    %v1134 = vadd.f32 %v1075, %v1133
    %v1135 = vand.u32 %v897, 4294901760
    %v1136 = vsub.f32 %v897, %v1135
    %v1137 = vand.u32 %v1136, 4294901760
    %1138 = vmatmul.f32.gmra.mxu0 %v1137
    %v1139 = vpop.f32.mrf.mxu0
    %v1140 = vadd.f32 %v1080, %v1139
    %v1141 = vand.u32 %v900, 4294901760
    %v1142 = vsub.f32 %v900, %v1141
    %v1143 = vand.u32 %v1142, 4294901760
    %1144 = vmatmul.f32.gmra.mxu0 %v1143
    %v1145 = vpop.f32.mrf.mxu0
    %v1146 = vadd.f32 %v1085, %v1145
    %v1147 = vand.u32 %v903, 4294901760
    %v1148 = vsub.f32 %v903, %v1147
    %v1149 = vand.u32 %v1148, 4294901760
    %1150 = vmatmul.f32.gmra.mxu0 %v1149
    %v1151 = vpop.f32.mrf.mxu0
    %v1152 = vadd.f32 %v1090, %v1151
    %v1153 = vand.u32 %v906, 4294901760
    %v1154 = vsub.f32 %v906, %v1153
    %v1155 = vand.u32 %v1154, 4294901760
    %1156 = vmatmul.f32.gmra.mxu0 %v1155
    %v1157 = vpop.f32.mrf.mxu0
    %v1158 = vadd.f32 %v1095, %v1157
    %v1159 = vand.u32 %v909, 4294901760
    %v1160 = vsub.f32 %v909, %v1159
    %v1161 = vand.u32 %v1160, 4294901760
    %1162 = vmatmul.f32.gmra.mxu0 %v1161
    %v1163 = vpop.f32.mrf.mxu0
    %v1164 = vadd.f32 %v1100, %v1163
    %v1165 = vand.u32 %v912, 4294901760
    %v1166 = vsub.f32 %v912, %v1165
    %v1167 = vand.u32 %v1166, 4294901760
    %1168 = vmatmul.f32.gmra.mxu0 %v1167
    %v1169 = vpop.f32.mrf.mxu0
    %v1170 = vadd.f32 %v1105, %v1169
    %v1171 = vand.u32 %v915, 4294901760
    %v1172 = vsub.f32 %v915, %v1171
    %v1173 = vand.u32 %v1172, 4294901760
    %1174 = vmatmul.f32.gmra.mxu0 %v1173
    %v1175 = vpop.f32.mrf.mxu0
    %v1176 = vadd.f32 %v1110, %v1175
    %1177 = vdwg.mxu0
    %1178 = vmatpush.msra.mxu0 0.0
    %1179 = vmatpush.msra.mxu0 0.0
    %1180 = vmatpush.msra.mxu0 0.0
    %1181 = vmatpush.msra.mxu0 0.0
    %1182 = vmatpush.msra.mxu0 0.0
    %1183 = vmatpush.msra.mxu0 0.0
    %1184 = vmatpush.msra.mxu0 0.0
    %1185 = vmatpush.msra.mxu0 0.0
    %1186 = vmatpush.msra.mxu0 0.0
    %1187 = vmatpush.msra.mxu0 0.0
    %1188 = vmatpush.msra.mxu0 0.0
    %1189 = vmatpush.msra.mxu0 0.0
    %1190 = vmatpush.msra.mxu0 0.0
    %1191 = vmatpush.msra.mxu0 0.0
    %1192 = vmatpush.msra.mxu0 0.0
    %v1193 = vand.u32 %v883, 4294901760
    %v1194 = vsub.f32 %v883, %v1193
    %v1195 = vand.u32 %v1194, 4294901760
    %1196 = vmatpush.msra.mxu0 %v1195
    %v1197 = vand.u32 %v894, 4294901760
    %1198 = vmatmul.f32.gmra.mxu0 %v1197
    %v1199 = vpop.f32.mrf.mxu0
    %v1200 = vadd.f32 %v1134, %v1199
    %v1201 = vand.u32 %v897, 4294901760
    %1202 = vmatmul.f32.gmra.mxu0 %v1201
    %v1203 = vpop.f32.mrf.mxu0
    %v1204 = vadd.f32 %v1140, %v1203
    %v1205 = vand.u32 %v900, 4294901760
    %1206 = vmatmul.f32.gmra.mxu0 %v1205
    %v1207 = vpop.f32.mrf.mxu0
    %v1208 = vadd.f32 %v1146, %v1207
    %v1209 = vand.u32 %v903, 4294901760
    %1210 = vmatmul.f32.gmra.mxu0 %v1209
    %v1211 = vpop.f32.mrf.mxu0
    %v1212 = vadd.f32 %v1152, %v1211
    %v1213 = vand.u32 %v906, 4294901760
    %1214 = vmatmul.f32.gmra.mxu0 %v1213
    %v1215 = vpop.f32.mrf.mxu0
    %v1216 = vadd.f32 %v1158, %v1215
    %v1217 = vand.u32 %v909, 4294901760
    %1218 = vmatmul.f32.gmra.mxu0 %v1217
    %v1219 = vpop.f32.mrf.mxu0
    %v1220 = vadd.f32 %v1164, %v1219
    %v1221 = vand.u32 %v912, 4294901760
    %1222 = vmatmul.f32.gmra.mxu0 %v1221
    %v1223 = vpop.f32.mrf.mxu0
    %v1224 = vadd.f32 %v1170, %v1223
    %v1225 = vand.u32 %v915, 4294901760
    %1226 = vmatmul.f32.gmra.mxu0 %v1225
    %v1227 = vpop.f32.mrf.mxu0
    %v1228 = vadd.f32 %v1176, %v1227
    %1229 = vdwg.mxu0
    %1230 = vmatpush.msra.mxu0 0.0
    %1231 = vmatpush.msra.mxu0 0.0
    %1232 = vmatpush.msra.mxu0 0.0
    %1233 = vmatpush.msra.mxu0 0.0
    %1234 = vmatpush.msra.mxu0 0.0
    %1235 = vmatpush.msra.mxu0 0.0
    %1236 = vmatpush.msra.mxu0 0.0
    %1237 = vmatpush.msra.mxu0 0.0
    %1238 = vmatpush.msra.mxu0 0.0
    %1239 = vmatpush.msra.mxu0 0.0
    %1240 = vmatpush.msra.mxu0 0.0
    %1241 = vmatpush.msra.mxu0 0.0
    %1242 = vmatpush.msra.mxu0 0.0
    %1243 = vmatpush.msra.mxu0 0.0
    %1244 = vmatpush.msra.mxu0 0.0
    %v1245 = vand.u32 %v883, 4294901760
    %1246 = vmatpush.msra.mxu0 %v1245
    %v1247 = vand.u32 %v894, 4294901760
    %1248 = vmatmul.f32.gmra.mxu0 %v1247
    %v1249 = vpop.f32.mrf.mxu0
    %v1250 = vadd.f32 %v1200, %v1249
    %v1251 = vand.u32 %v897, 4294901760
    %1252 = vmatmul.f32.gmra.mxu0 %v1251
    %v1253 = vpop.f32.mrf.mxu0
    %v1254 = vadd.f32 %v1204, %v1253
    %v1255 = vand.u32 %v900, 4294901760
    %1256 = vmatmul.f32.gmra.mxu0 %v1255
    %v1257 = vpop.f32.mrf.mxu0
    %v1258 = vadd.f32 %v1208, %v1257
    %v1259 = vand.u32 %v903, 4294901760
    %1260 = vmatmul.f32.gmra.mxu0 %v1259
    %v1261 = vpop.f32.mrf.mxu0
    %v1262 = vadd.f32 %v1212, %v1261
    %v1263 = vand.u32 %v906, 4294901760
    %1264 = vmatmul.f32.gmra.mxu0 %v1263
    %v1265 = vpop.f32.mrf.mxu0
    %v1266 = vadd.f32 %v1216, %v1265
    %v1267 = vand.u32 %v909, 4294901760
    %1268 = vmatmul.f32.gmra.mxu0 %v1267
    %v1269 = vpop.f32.mrf.mxu0
    %v1270 = vadd.f32 %v1220, %v1269
    %v1271 = vand.u32 %v912, 4294901760
    %1272 = vmatmul.f32.gmra.mxu0 %v1271
    %v1273 = vpop.f32.mrf.mxu0
    %v1274 = vadd.f32 %v1224, %v1273
    %v1275 = vand.u32 %v915, 4294901760
    %1276 = vmatmul.f32.gmra.mxu0 %v1275
    %v1277 = vpop.f32.mrf.mxu0
    %v1278 = vadd.f32 %v1228, %v1277
    %1279 = vdwg.mxu0
    %v1280 = vmul.f32 %v855, %v1250
    %v1281 = vmul.f32 %v856, %v1254
    %v1282 = vmul.f32 %v857, %v1258
    %v1283 = vmul.f32 %v858, %v1262
    %v1284 = vmul.f32 %v859, %v1266
    %v1285 = vmul.f32 %v860, %v1270
    %v1286 = vmul.f32 %v861, %v1274
    %v1287 = vmul.f32 %v862, %v1278
    %v1288 = vadd.f32 %v1280, %v1281
    %v1289 = vadd.f32 %v1288, %v1282
    %v1290 = vadd.f32 %v1289, %v1283
    %v1291 = vadd.f32 %v1290, %v1284
    %v1292 = vadd.f32 %v1291, %v1285
    %v1293 = vadd.f32 %v1292, %v1286
    %v1294 = vadd.f32 %v1293, %v1287
    %v1295 = vrot.slane %v1294, 4
    %v1296 = vadd.f32 %v1294, %v1295
    %v1297 = vrot.slane %v1296, 2
    %v1298 = vadd.f32 %v1296, %v1297
    %v1299 = vrot.slane %v1298, 1
    %v1300 = vadd.f32 %v1298, %v1299
    %v1301 = vstv %s16
    %v1302 = vadd.f32 %v1300, %v1301
    %1303 = vst [vmem:[#allocation3] sm:$0x1] %v1302
    // Predicated region
    $region14: #{tpu_custom_call.1} parent=1 // pred_check
      _
    $region15: #{tpu_custom_call.1} parent=1 // pred_check_branch
      %1305 = sbr.rel (0) target = $region17
    $region16: #{tpu_custom_call.1} parent=1 // pred_region
      %1307 = vsyncadd [#allocation4], 0
      %s1309 = sshll.u32 [#allocation3], 4
      %s1310 = int_to_ptr.vmem [resolvable:$true] %s1309
      %s1311 = sshll.u32 %s3, 4
      %s1312 = int_to_ptr.hbm [resolvable:$true] %s1311
      %1314 = dma.vmem_to_hbm [thread:$0]  %s1310, 16, %s1312, [#allocation4]
    $region17: #{tpu_custom_call.1} parent=1 // pred_fallthru
      _
    // Predicated region
    $region18: #{tpu_custom_call.1} parent=1 // pred_check
      _
    $region19: #{tpu_custom_call.1} parent=1 // pred_check_branch
      %1316 = sbr.rel (0) target = $region21
    $region20: #{tpu_custom_call.1} parent=1 // pred_region
      %1318 = dma.done [#allocation4], 16
    $region21: #{tpu_custom_call.1} parent=1 // pred_fallthru
      _
    %1319 = vsyncpa [#allocation4], 1

</llo_original>
